<compile_context>
chip_gen: v6e
topology: v6e:2x2x1
jax: 0.10.0
libtpu: 0.0.40
codegen_flags: <defaults>
</compile_context>

<pallas_src>
import jax
import jax.numpy as jnp
from jax import lax
from jax.experimental import pallas as pl
from jax.experimental.pallas import tpu as pltpu


def _dist_predictor_kernel(tcr_ref, epi_ref, w_ref, b_ref, out_ref, pad_ref):
    # tcr_ref: (Bb, T, H)  epi_ref: (Bb, E, H)   (position 0 already dropped,
    #                                             padding masks baked in = zeros)
    # w_ref:   (9, O, H) bf16   b_ref: (O, 1) f32
    # out_ref: (1, O, Bb*T*E)   pad_ref: scratch (Bb, T+2, E+2, H) f32
    Bb, T, H = tcr_ref.shape
    E = epi_ref.shape[1]
    O = w_ref.shape[1]
    M = Bb * T * E

    # The 1-wide halo is read-only and the interior is fully overwritten every
    # grid step, so zero the scratch exactly once.  (Batch-block axis must be
    # "arbitrary" since this carries scratch state across steps.)
    @pl.when(pl.program_id(0) == 0)
    def _():
        pad_ref[...] = jnp.zeros(pad_ref.shape, pad_ref.dtype)

    # Interaction map.  masked_fill(-inf) + relu == relu with masked features
    # zeroed (done in the wrapper), so a plain relu of the outer product is exact.
    tcr = tcr_ref[...]                                            # (Bb, T, H)
    epi = epi_ref[...]                                            # (Bb, E, H)
    x = jnp.maximum(tcr[:, :, None, :] * epi[:, None, :, :], 0.0)  # (Bb,T,E,H)
    pad_ref[:, pl.ds(1, T), pl.ds(1, E), :] = x                    # halo interior

    # 3x3 conv (padding=1) as 9 shifted-window matmuls, accumulated transposed:
    # each dot is (O, H) x (M, H)^T -> (O, M), so the accumulator (and the final
    # store) is dense along the 128-lane axis (M = Bb*T*E), not along O=2.
    acc = jnp.zeros((O, M), jnp.float32)
    dnums = (((1,), (1,)), ((), ()))                   # contract H against H
    for k in range(9):
        dy, dx = k // 3, k % 3
        win = pad_ref[:, pl.ds(dy, T), pl.ds(dx, E), :]            # (Bb,T,E,H)
        win2 = win.reshape(M, H).astype(jnp.bfloat16)              # (M, H)
        acc = acc + lax.dot_general(w_ref[k], win2, dnums,
                                    preferred_element_type=jnp.float32)

    res = acc + b_ref[...]                                         # (O,M)+(O,1)
    # channel 0 -> relu (out_dist), channel 1 -> sigmoid (out_contact)
    row = lax.broadcasted_iota(jnp.int32, (O, M), 0)
    out_ref[0] = jnp.where(row == 0, jnp.maximum(res, 0.0), jax.nn.sigmoid(res))


def dist_predictor(tcr_feat, epi_feat, tcr_padding_mask, epi_padding_mask,
                   weight, bias, *, block_b=None):
    """tcr_feat: (B, H, Lt), epi_feat: (B, H, Le)  (PyTorch NCL layout)
       *_padding_mask: (B, L) bool, True == padded
       weight: (O, H, 3, 3) (PyTorch OIHW), bias: (O,)
       returns (B, Lt-1, Le-1, 2) float32."""
    B, H, Lt = tcr_feat.shape
    Le = epi_feat.shape[2]
    T, E = Lt - 1, Le - 1
    O = weight.shape[0]
    if O != 2:
        # forward() uses exactly channel 0 (relu) and channel 1 (sigmoid)
        raise ValueError("DistPredictor forward requires out_dim == 2")

    # Batch-block size: aim for block_b*T*E >= 128 matmul rows (largest divisor
    # of B not exceeding that target).  For production T/E on v7x, re-derive
    # this against its 64 MiB VMEM and set vmem_limit_bytes explicitly.
    if block_b is None:
        target = max(1, -(-128 // (T * E)))
        block_b = 1
        for d in range(1, B + 1):
            if B % d == 0 and d <= target:
                block_b = d
    assert B % block_b == 0
    nb = B // block_b
    m_blk = block_b * T * E

    # Drop position 0, go channels-last, bake the padding masks into the
    # features (zeroed rows/cols -> inter == 0 at masked positions == the
    # masked_fill(-inf)+relu result), so the kernel needs no mask inputs.
    tcr = jnp.transpose(tcr_feat[:, :, 1:], (0, 2, 1)).astype(jnp.float32)
    epi = jnp.transpose(epi_feat[:, :, 1:], (0, 2, 1)).astype(jnp.float32)
    tcr = jnp.where(tcr_padding_mask[:, 1:, None], 0.0, tcr)      # (B, T, H)
    epi = jnp.where(epi_padding_mask[:, 1:, None], 0.0, epi)      # (B, E, H)

    # (O, H, 3, 3) -> (9, O, H) bf16,   tap index k = ky*3 + kx
    w9 = jnp.transpose(weight, (2, 3, 0, 1)).reshape(9, O, H).astype(jnp.bfloat16)
    b2 = bias.reshape(O, 1).astype(jnp.float32)

    out = pl.pallas_call(
        _dist_predictor_kernel,
        out_shape=jax.ShapeDtypeStruct((nb, O, m_blk), jnp.float32),
        grid_spec=pltpu.PrefetchScalarGridSpec(
            num_scalar_prefetch=0,
            grid=(nb,),
            in_specs=[
                pl.BlockSpec((block_b, T, H), lambda i: (i, 0, 0)),
                pl.BlockSpec((block_b, E, H), lambda i: (i, 0, 0)),
                pl.BlockSpec((9, O, H), lambda i: (0, 0, 0)),
                pl.BlockSpec((O, 1), lambda i: (0, 0)),
            ],
            out_specs=pl.BlockSpec((1, O, m_blk), lambda i: (i, 0, 0)),
            scratch_shapes=[
                pltpu.VMEM((block_b, T + 2, E + 2, H), jnp.float32)],
        ),
        # "arbitrary": the zero-once halo scratch is carried across grid steps.
        compiler_params=pltpu.CompilerParams(
            dimension_semantics=("arbitrary",)),
    )(tcr, epi, w9, b2)

    # (nb, O, block_b*T*E) -> (B, T, E, O)  (pure XLA-side layout plumbing)
    out = out.reshape(nb, O, block_b, T, E)
    out = jnp.transpose(out, (0, 2, 3, 4, 1)).reshape(B, T, E, O)
    return out


def dist_predictor_ref(tcr_feat, epi_feat, tcr_mask, epi_mask, weight, bias):
    """Pure-JAX reference mirroring the PyTorch forward (NCHW conv)."""
    inter_mask = jnp.logical_or(tcr_mask[:, 1:, None], epi_mask[:, None, 1:])
    t = tcr_feat[:, :, 1:][:, :, :, None]
    e = epi_feat[:, :, 1:][:, :, None, :]
    inter = t * e
    inter = jnp.where(inter_mask[:, None, :, :], -jnp.inf, inter)
    x = jax.nn.relu(inter)
    dist_map = jax.lax.conv_general_dilated(
        x, weight, window_strides=(1, 1), padding=((1, 1), (1, 1)),
        dimension_numbers=("NCHW", "OIHW", "NCHW"),
        precision=jax.lax.Precision.HIGHEST) + bias[None, :, None, None]
    out_dist = jax.nn.relu(dist_map[:, 0])
    out_contact = jax.nn.sigmoid(dist_map[:, 1])
    return jnp.stack([out_dist, out_contact], axis=-1)


if __name__ == "__main__":
    key = jax.random.PRNGKey(0)
    B, H, O = 2, 32, 2          # hid_dim=32, out_dim=2
    Lt, Le = 9, 9               # sequence lengths (feature position 0 dropped)
    k1, k2, k3, k4 = jax.random.split(key, 4)

    tcr_feat = jax.random.normal(k1, (B, H, Lt), jnp.float32)
    epi_feat = jax.random.normal(k2, (B, H, Le), jnp.float32)
    # padding masks: True == padded
    tcr_mask = jnp.arange(Lt)[None, :] >= jnp.array([7, 9])[:, None]
    epi_mask = jnp.arange(Le)[None, :] >= jnp.array([9, 6])[:, None]

    # deterministic Conv2d-style init (uniform in +-1/sqrt(fan_in))
    fan_in = H * 3 * 3
    bound = 1.0 / (fan_in ** 0.5)
    weight = jax.random.uniform(k3, (O, H, 3, 3), jnp.float32, -bound, bound)
    bias = jax.random.uniform(k4, (O,), jnp.float32, -bound, bound)

    out = dist_predictor(tcr_feat, epi_feat, tcr_mask, epi_mask, weight, bias)
    out = jax.block_until_ready(out)

    ref = dist_predictor_ref(tcr_feat, epi_feat, tcr_mask, epi_mask, weight, bias)
    assert out.shape == (B, Lt - 1, Le - 1, 2), out.shape
    # bf16 MXU operands (f32 accumulation) -> small deviation vs f32 HIGHEST ref
    max_err = float(jnp.max(jnp.abs(out - ref)))
    assert jnp.allclose(out, ref, atol=1e-2, rtol=1e-2), max_err
    print("KERNEL_OK")
</pallas_src>

<mosaic_0001>
module attributes {stable_mosaic.version = 11 : i64} {
  func.func @_dist_predictor_kernel(%arg0: i32, %arg1: memref<2x8x32xf32, #tpu.memory_space<vmem>>, %arg2: memref<2x8x32xf32, #tpu.memory_space<vmem>>, %arg3: memref<9x2x32xbf16, #tpu.memory_space<vmem>>, %arg4: memref<2x1xf32, #tpu.memory_space<vmem>>, %arg5: memref<1x2x128xf32, #tpu.memory_space<vmem>>, %arg6: memref<2x10x10x32xf32, #tpu.memory_space<vmem>>) attributes {dimension_semantics = [#tpu.dimension_semantics<arbitrary>], iteration_bounds = array<i64: 1>, scalar_prefetch = 0 : i64, scratch_operands = 1 : i64, tpu.core_type = #tpu.core_type<tc>, window_params = [{transform_indices = @transform_0, window_bounds = array<i64: 2, 8, 32>}, {transform_indices = @transform_1, window_bounds = array<i64: 2, 8, 32>}, {pipeline_mode = #tpu.pipeline_mode<synchronous>, transform_indices = @transform_2, window_bounds = array<i64: 9, 2, 32>}, {pipeline_mode = #tpu.pipeline_mode<synchronous>, transform_indices = @transform_3, window_bounds = array<i64: 2, 1>}, {transform_indices = @transform_4, window_bounds = array<i64: 1, 2, 128>}]} {
    %c0_i32 = arith.constant 0 : i32
    %0 = arith.cmpi eq, %arg0, %c0_i32 : i32
    %1 = arith.extui %0 : i1 to i32
    %c0_i32_0 = arith.constant 0 : i32
    %2 = arith.cmpi ne, %1, %c0_i32_0 : i32
    scf.if %2 {
      %cst_83 = arith.constant 0.000000e+00 : f32
      %94 = vector.broadcast %cst_83 : f32 to vector<2x10x10x32xf32>
      %c0_84 = arith.constant 0 : index
      %c0_85 = arith.constant 0 : index
      %c0_86 = arith.constant 0 : index
      %c0_87 = arith.constant 0 : index
      %95 = vector.load %arg6[%c0_84, %c0_85, %c0_86, %c0_87] : memref<2x10x10x32xf32, #tpu.memory_space<vmem>>, vector<2x10x10x32xf32>
      tpu.vector_store %arg6[%c0_84, %c0_85, %c0_86, %c0_87], %94 {strides = array<i32>} : memref<2x10x10x32xf32, #tpu.memory_space<vmem>>, vector<2x10x10x32xf32>,
    } else {
    }
    %c0 = arith.constant 0 : index
    %c0_1 = arith.constant 0 : index
    %c0_2 = arith.constant 0 : index
    %3 = vector.load %arg1[%c0, %c0_1, %c0_2] : memref<2x8x32xf32, #tpu.memory_space<vmem>>, vector<2x8x32xf32>
    %c0_3 = arith.constant 0 : index
    %c0_4 = arith.constant 0 : index
    %c0_5 = arith.constant 0 : index
    %4 = vector.load %arg2[%c0_3, %c0_4, %c0_5] : memref<2x8x32xf32, #tpu.memory_space<vmem>>, vector<2x8x32xf32>
    %5 = vector.shape_cast %3 : vector<2x8x32xf32> to vector<2x8x1x32xf32>
    %6 = vector.shape_cast %4 : vector<2x8x32xf32> to vector<2x1x8x32xf32>
    %7 = vector.broadcast %5 : vector<2x8x1x32xf32> to vector<2x8x8x32xf32>
    %8 = vector.broadcast %6 : vector<2x1x8x32xf32> to vector<2x8x8x32xf32>
    %9 = arith.mulf %7, %8 : vector<2x8x8x32xf32>
    %cst = arith.constant 0.000000e+00 : f32
    %10 = vector.broadcast %cst : f32 to vector<2x8x8x32xf32>
    %11 = arith.maximumf %9, %10 : vector<2x8x8x32xf32>
    %c0_6 = arith.constant 0 : index
    %c1 = arith.constant 1 : index
    %c1_7 = arith.constant 1 : index
    %c0_8 = arith.constant 0 : index
    %12 = vector.load %arg6[%c0_6, %c1, %c1_7, %c0_8] : memref<2x10x10x32xf32, #tpu.memory_space<vmem>>, vector<2x8x8x32xf32>
    tpu.vector_store %arg6[%c0_6, %c1, %c1_7, %c0_8], %11 {strides = array<i32>} : memref<2x10x10x32xf32, #tpu.memory_space<vmem>>, vector<2x8x8x32xf32>,
    %cst_9 = arith.constant 0.000000e+00 : f32
    %13 = vector.broadcast %cst_9 : f32 to vector<2x128xf32>
    %c0_10 = arith.constant 0 : index
    %c0_11 = arith.constant 0 : index
    %c0_12 = arith.constant 0 : index
    %c0_13 = arith.constant 0 : index
    %14 = vector.load %arg6[%c0_10, %c0_11, %c0_12, %c0_13] : memref<2x10x10x32xf32, #tpu.memory_space<vmem>>, vector<2x8x8x32xf32>
    %15 = vector.shape_cast %14 : vector<2x8x8x32xf32> to vector<128x32xf32>
    %16 = arith.truncf %15 : vector<128x32xf32> to vector<128x32xbf16>
    %c0_14 = arith.constant 0 : index
    %c0_15 = arith.constant 0 : index
    %c0_16 = arith.constant 0 : index
    %17 = vector.load %arg3[%c0_14, %c0_15, %c0_16] : memref<9x2x32xbf16, #tpu.memory_space<vmem>>, vector<1x2x32xbf16>
    %18 = vector.shape_cast %17 : vector<1x2x32xbf16> to vector<2x32xbf16>
    %cst_17 = arith.constant dense<0.000000e+00> : vector<2x128xf32>
    %19 = tpu.matmul %18, %16, %cst_17 {dimension_numbers = #tpu.dot_dimension_numbers<[1], [1], [0], [0], [0, 0, 1, 0], [], []>} : vector<2x32xbf16>, vector<128x32xbf16>, vector<2x128xf32> -> vector<2x128xf32>
    %20 = arith.addf %13, %19 : vector<2x128xf32>
    %c0_18 = arith.constant 0 : index
    %c0_19 = arith.constant 0 : index
    %c1_20 = arith.constant 1 : index
    %c0_21 = arith.constant 0 : index
    %21 = vector.load %arg6[%c0_18, %c0_19, %c1_20, %c0_21] : memref<2x10x10x32xf32, #tpu.memory_space<vmem>>, vector<2x8x8x32xf32>
    %22 = vector.shape_cast %21 : vector<2x8x8x32xf32> to vector<128x32xf32>
    %23 = arith.truncf %22 : vector<128x32xf32> to vector<128x32xbf16>
    %c1_22 = arith.constant 1 : index
    %c0_23 = arith.constant 0 : index
    %c0_24 = arith.constant 0 : index
    %24 = vector.load %arg3[%c1_22, %c0_23, %c0_24] : memref<9x2x32xbf16, #tpu.memory_space<vmem>>, vector<1x2x32xbf16>
    %25 = vector.shape_cast %24 : vector<1x2x32xbf16> to vector<2x32xbf16>
    %cst_25 = arith.constant dense<0.000000e+00> : vector<2x128xf32>
    %26 = tpu.matmul %25, %23, %cst_25 {dimension_numbers = #tpu.dot_dimension_numbers<[1], [1], [0], [0], [0, 0, 1, 0], [], []>} : vector<2x32xbf16>, vector<128x32xbf16>, vector<2x128xf32> -> vector<2x128xf32>
    %27 = arith.addf %20, %26 : vector<2x128xf32>
    %c0_26 = arith.constant 0 : index
    %c0_27 = arith.constant 0 : index
    %c2 = arith.constant 2 : index
    %c0_28 = arith.constant 0 : index
    %28 = vector.load %arg6[%c0_26, %c0_27, %c2, %c0_28] : memref<2x10x10x32xf32, #tpu.memory_space<vmem>>, vector<2x8x8x32xf32>
    %29 = vector.shape_cast %28 : vector<2x8x8x32xf32> to vector<128x32xf32>
    %30 = arith.truncf %29 : vector<128x32xf32> to vector<128x32xbf16>
    %c2_29 = arith.constant 2 : index
    %c0_30 = arith.constant 0 : index
    %c0_31 = arith.constant 0 : index
    %31 = vector.load %arg3[%c2_29, %c0_30, %c0_31] : memref<9x2x32xbf16, #tpu.memory_space<vmem>>, vector<1x2x32xbf16>
    %32 = vector.shape_cast %31 : vector<1x2x32xbf16> to vector<2x32xbf16>
    %cst_32 = arith.constant dense<0.000000e+00> : vector<2x128xf32>
    %33 = tpu.matmul %32, %30, %cst_32 {dimension_numbers = #tpu.dot_dimension_numbers<[1], [1], [0], [0], [0, 0, 1, 0], [], []>} : vector<2x32xbf16>, vector<128x32xbf16>, vector<2x128xf32> -> vector<2x128xf32>
    %34 = arith.addf %27, %33 : vector<2x128xf32>
    %c0_33 = arith.constant 0 : index
    %c1_34 = arith.constant 1 : index
    %c0_35 = arith.constant 0 : index
    %c0_36 = arith.constant 0 : index
    %35 = vector.load %arg6[%c0_33, %c1_34, %c0_35, %c0_36] : memref<2x10x10x32xf32, #tpu.memory_space<vmem>>, vector<2x8x8x32xf32>
    %36 = vector.shape_cast %35 : vector<2x8x8x32xf32> to vector<128x32xf32>
    %37 = arith.truncf %36 : vector<128x32xf32> to vector<128x32xbf16>
    %c3 = arith.constant 3 : index
    %c0_37 = arith.constant 0 : index
    %c0_38 = arith.constant 0 : index
    %38 = vector.load %arg3[%c3, %c0_37, %c0_38] : memref<9x2x32xbf16, #tpu.memory_space<vmem>>, vector<1x2x32xbf16>
    %39 = vector.shape_cast %38 : vector<1x2x32xbf16> to vector<2x32xbf16>
    %cst_39 = arith.constant dense<0.000000e+00> : vector<2x128xf32>
    %40 = tpu.matmul %39, %37, %cst_39 {dimension_numbers = #tpu.dot_dimension_numbers<[1], [1], [0], [0], [0, 0, 1, 0], [], []>} : vector<2x32xbf16>, vector<128x32xbf16>, vector<2x128xf32> -> vector<2x128xf32>
    %41 = arith.addf %34, %40 : vector<2x128xf32>
    %c0_40 = arith.constant 0 : index
    %c1_41 = arith.constant 1 : index
    %c1_42 = arith.constant 1 : index
    %c0_43 = arith.constant 0 : index
    %42 = vector.load %arg6[%c0_40, %c1_41, %c1_42, %c0_43] : memref<2x10x10x32xf32, #tpu.memory_space<vmem>>, vector<2x8x8x32xf32>
    %43 = vector.shape_cast %42 : vector<2x8x8x32xf32> to vector<128x32xf32>
    %44 = arith.truncf %43 : vector<128x32xf32> to vector<128x32xbf16>
    %c4 = arith.constant 4 : index
    %c0_44 = arith.constant 0 : index
    %c0_45 = arith.constant 0 : index
    %45 = vector.load %arg3[%c4, %c0_44, %c0_45] : memref<9x2x32xbf16, #tpu.memory_space<vmem>>, vector<1x2x32xbf16>
    %46 = vector.shape_cast %45 : vector<1x2x32xbf16> to vector<2x32xbf16>
    %cst_46 = arith.constant dense<0.000000e+00> : vector<2x128xf32>
    %47 = tpu.matmul %46, %44, %cst_46 {dimension_numbers = #tpu.dot_dimension_numbers<[1], [1], [0], [0], [0, 0, 1, 0], [], []>} : vector<2x32xbf16>, vector<128x32xbf16>, vector<2x128xf32> -> vector<2x128xf32>
    %48 = arith.addf %41, %47 : vector<2x128xf32>
    %c0_47 = arith.constant 0 : index
    %c1_48 = arith.constant 1 : index
    %c2_49 = arith.constant 2 : index
    %c0_50 = arith.constant 0 : index
    %49 = vector.load %arg6[%c0_47, %c1_48, %c2_49, %c0_50] : memref<2x10x10x32xf32, #tpu.memory_space<vmem>>, vector<2x8x8x32xf32>
    %50 = vector.shape_cast %49 : vector<2x8x8x32xf32> to vector<128x32xf32>
    %51 = arith.truncf %50 : vector<128x32xf32> to vector<128x32xbf16>
    %c5 = arith.constant 5 : index
    %c0_51 = arith.constant 0 : index
    %c0_52 = arith.constant 0 : index
    %52 = vector.load %arg3[%c5, %c0_51, %c0_52] : memref<9x2x32xbf16, #tpu.memory_space<vmem>>, vector<1x2x32xbf16>
    %53 = vector.shape_cast %52 : vector<1x2x32xbf16> to vector<2x32xbf16>
    %cst_53 = arith.constant dense<0.000000e+00> : vector<2x128xf32>
    %54 = tpu.matmul %53, %51, %cst_53 {dimension_numbers = #tpu.dot_dimension_numbers<[1], [1], [0], [0], [0, 0, 1, 0], [], []>} : vector<2x32xbf16>, vector<128x32xbf16>, vector<2x128xf32> -> vector<2x128xf32>
    %55 = arith.addf %48, %54 : vector<2x128xf32>
    %c0_54 = arith.constant 0 : index
    %c2_55 = arith.constant 2 : index
    %c0_56 = arith.constant 0 : index
    %c0_57 = arith.constant 0 : index
    %56 = vector.load %arg6[%c0_54, %c2_55, %c0_56, %c0_57] : memref<2x10x10x32xf32, #tpu.memory_space<vmem>>, vector<2x8x8x32xf32>
    %57 = vector.shape_cast %56 : vector<2x8x8x32xf32> to vector<128x32xf32>
    %58 = arith.truncf %57 : vector<128x32xf32> to vector<128x32xbf16>
    %c6 = arith.constant 6 : index
    %c0_58 = arith.constant 0 : index
    %c0_59 = arith.constant 0 : index
    %59 = vector.load %arg3[%c6, %c0_58, %c0_59] : memref<9x2x32xbf16, #tpu.memory_space<vmem>>, vector<1x2x32xbf16>
    %60 = vector.shape_cast %59 : vector<1x2x32xbf16> to vector<2x32xbf16>
    %cst_60 = arith.constant dense<0.000000e+00> : vector<2x128xf32>
    %61 = tpu.matmul %60, %58, %cst_60 {dimension_numbers = #tpu.dot_dimension_numbers<[1], [1], [0], [0], [0, 0, 1, 0], [], []>} : vector<2x32xbf16>, vector<128x32xbf16>, vector<2x128xf32> -> vector<2x128xf32>
    %62 = arith.addf %55, %61 : vector<2x128xf32>
    %c0_61 = arith.constant 0 : index
    %c2_62 = arith.constant 2 : index
    %c1_63 = arith.constant 1 : index
    %c0_64 = arith.constant 0 : index
    %63 = vector.load %arg6[%c0_61, %c2_62, %c1_63, %c0_64] : memref<2x10x10x32xf32, #tpu.memory_space<vmem>>, vector<2x8x8x32xf32>
    %64 = vector.shape_cast %63 : vector<2x8x8x32xf32> to vector<128x32xf32>
    %65 = arith.truncf %64 : vector<128x32xf32> to vector<128x32xbf16>
    %c7 = arith.constant 7 : index
    %c0_65 = arith.constant 0 : index
    %c0_66 = arith.constant 0 : index
    %66 = vector.load %arg3[%c7, %c0_65, %c0_66] : memref<9x2x32xbf16, #tpu.memory_space<vmem>>, vector<1x2x32xbf16>
    %67 = vector.shape_cast %66 : vector<1x2x32xbf16> to vector<2x32xbf16>
    %cst_67 = arith.constant dense<0.000000e+00> : vector<2x128xf32>
    %68 = tpu.matmul %67, %65, %cst_67 {dimension_numbers = #tpu.dot_dimension_numbers<[1], [1], [0], [0], [0, 0, 1, 0], [], []>} : vector<2x32xbf16>, vector<128x32xbf16>, vector<2x128xf32> -> vector<2x128xf32>
    %69 = arith.addf %62, %68 : vector<2x128xf32>
    %c0_68 = arith.constant 0 : index
    %c2_69 = arith.constant 2 : index
    %c2_70 = arith.constant 2 : index
    %c0_71 = arith.constant 0 : index
    %70 = vector.load %arg6[%c0_68, %c2_69, %c2_70, %c0_71] : memref<2x10x10x32xf32, #tpu.memory_space<vmem>>, vector<2x8x8x32xf32>
    %71 = vector.shape_cast %70 : vector<2x8x8x32xf32> to vector<128x32xf32>
    %72 = arith.truncf %71 : vector<128x32xf32> to vector<128x32xbf16>
    %c8 = arith.constant 8 : index
    %c0_72 = arith.constant 0 : index
    %c0_73 = arith.constant 0 : index
    %73 = vector.load %arg3[%c8, %c0_72, %c0_73] : memref<9x2x32xbf16, #tpu.memory_space<vmem>>, vector<1x2x32xbf16>
    %74 = vector.shape_cast %73 : vector<1x2x32xbf16> to vector<2x32xbf16>
    %cst_74 = arith.constant dense<0.000000e+00> : vector<2x128xf32>
    %75 = tpu.matmul %74, %72, %cst_74 {dimension_numbers = #tpu.dot_dimension_numbers<[1], [1], [0], [0], [0, 0, 1, 0], [], []>} : vector<2x32xbf16>, vector<128x32xbf16>, vector<2x128xf32> -> vector<2x128xf32>
    %76 = arith.addf %69, %75 : vector<2x128xf32>
    %c0_75 = arith.constant 0 : index
    %c0_76 = arith.constant 0 : index
    %77 = vector.load %arg4[%c0_75, %c0_76] : memref<2x1xf32, #tpu.memory_space<vmem>>, vector<2x1xf32>
    %78 = vector.broadcast %77 : vector<2x1xf32> to vector<2x128xf32>
    %79 = arith.addf %76, %78 : vector<2x128xf32>
    %80 = tpu.iota {dimensions = array<i32: 0>} : vector<2x128xi32>
    %c0_i32_77 = arith.constant 0 : i32
    %81 = vector.broadcast %c0_i32_77 : i32 to vector<2x128xi32>
    %82 = arith.cmpi eq, %80, %81 : vector<2x128xi32>
    %cst_78 = arith.constant 0.000000e+00 : f32
    %83 = vector.broadcast %cst_78 : f32 to vector<2x128xf32>
    %84 = arith.maximumf %79, %83 : vector<2x128xf32>
    %85 = arith.negf %79 : vector<2x128xf32>
    %86 = math.exp %85 : vector<2x128xf32>
    %cst_79 = arith.constant 1.000000e+00 : f32
    %87 = vector.broadcast %cst_79 : f32 to vector<2x128xf32>
    %88 = arith.addf %87, %86 : vector<2x128xf32>
    %89 = arith.divf %87, %88 : vector<2x128xf32>
    %90 = arith.select %82, %84, %89 : vector<2x128xi1>, vector<2x128xf32>
    %c0_80 = arith.constant 0 : index
    %c0_81 = arith.constant 0 : index
    %c0_82 = arith.constant 0 : index
    %91 = vector.load %arg5[%c0_80, %c0_81, %c0_82] : memref<1x2x128xf32, #tpu.memory_space<vmem>>, vector<1x2x128xf32>
    %92 = vector.shape_cast %91 : vector<1x2x128xf32> to vector<2x128xf32>
    %93 = vector.shape_cast %90 : vector<2x128xf32> to vector<1x2x128xf32>
    tpu.vector_store %arg5[%c0_80, %c0_81, %c0_82], %93 {strides = array<i32>} : memref<1x2x128xf32, #tpu.memory_space<vmem>>, vector<1x2x128xf32>,
    return
  }
  func.func @transform_0(%arg0: i32) -> (i32, i32, i32) {
    %c0_i32 = arith.constant 0 : i32
    %c0_i32_0 = arith.constant 0 : i32
    %c0_i32_1 = arith.constant 0 : i32
    return %arg0, %c0_i32, %c0_i32_0 : i32, i32, i32
  }
  func.func @transform_1(%arg0: i32) -> (i32, i32, i32) {
    %c0_i32 = arith.constant 0 : i32
    %c0_i32_0 = arith.constant 0 : i32
    %c0_i32_1 = arith.constant 0 : i32
    return %arg0, %c0_i32, %c0_i32_0 : i32, i32, i32
  }
  func.func @transform_2(%arg0: i32) -> (i32, i32, i32) {
    %c0_i32 = arith.constant 0 : i32
    %c0_i32_0 = arith.constant 0 : i32
    %c0_i32_1 = arith.constant 0 : i32
    %c0_i32_2 = arith.constant 0 : i32
    return %c0_i32, %c0_i32_0, %c0_i32_1 : i32, i32, i32
  }
  func.func @transform_3(%arg0: i32) -> (i32, i32) {
    %c0_i32 = arith.constant 0 : i32
    %c0_i32_0 = arith.constant 0 : i32
    %c0_i32_1 = arith.constant 0 : i32
    return %c0_i32, %c0_i32_0 : i32, i32
  }
  func.func @transform_4(%arg0: i32) -> (i32, i32, i32) {
    %c0_i32 = arith.constant 0 : i32
    %c0_i32_0 = arith.constant 0 : i32
    %c0_i32_1 = arith.constant 0 : i32
    return %arg0, %c0_i32, %c0_i32_0 : i32, i32, i32
  }
}

</mosaic_0001>

<llo_original>
// kernel: tpu_custom_call.1
$region0: #{tpu_custom_call.1}
  #allocation0 [shape = 'u32[]', space=smem, size = 0x4, offset = 0x4, fixed_abs, tag = 'smem constant byte address 0x4 - core index']
  #allocation1 [shape = 'u32[144,128]{1,0:T(1,128)}', space=vmem, size = 0x12000, scoped, tag = 'internal scratch']
  #allocation2 [shape = 'f32[2,10,10,32]{3,2,1,0:T(8,128)}', space=vmem, size = 0x28000, scoped, tag = 'scratch operand']
  %s0 = inlined_call_operand.hbm [shape: f32[2,8,32], index: 0, kind: input, shape index: {}]
  %s1 = inlined_call_operand.hbm [shape: f32[2,8,32], index: 1, kind: input, shape index: {}]
  %s2 = inlined_call_operand.hbm [shape: bf16[9,2,32], index: 2, kind: input, shape index: {}]
  %s3 = inlined_call_operand.vmem [shape: f32[2,1], index: 3, kind: input, shape index: {}]
  %s4 = inlined_call_operand.hbm [shape: f32[1,2,128], index: 4, kind: output, shape index: {}]
  %s5 = sld [smem:[#allocation0]]
  $region42: #{tpu_custom_call.1} parent=0
    _
  %s7 = ssub.s32 1, %s5
  %s8 = scalar_select 0, %s7, %s5
  $region1: #{tpu_custom_call.1} parent=0
    #allocation3 [shape = 'u8[8192]{0}', space=vmem, size = 0x2000, scoped, tag = 'input window, operand 0, single buffered']
    #allocation4 [shape = 's32[1]{0}', space=sflag, size = 0x4, scoped, tag = 'scoped memory for tpu_custom_call.1']
    #allocation5 [shape = 's32[1]{0}', space=sflag, size = 0x4, scoped, tag = 'scoped memory for tpu_custom_call.1']
    #allocation6 [shape = 'u8[8192]{0}', space=vmem, size = 0x2000, scoped, tag = 'input window, operand 1, single buffered']
    #allocation7 [shape = 's32[1]{0}', space=sflag, size = 0x4, scoped, tag = 'scoped memory for tpu_custom_call.1']
    #allocation8 [shape = 'u8[4608]{0}', space=vmem, size = 0x1400, scoped, tag = 'input window, operand 2, single buffered']
    #allocation9 [shape = 'u8[1024]{0}', space=vmem, size = 0x400, scoped, tag = 'output window, operand 0, single buffered']
    %9 = vsyncpa [#allocation4], 0
    %10 = vsyncpa [#allocation7], 0
    %11 = vsyncpa [#allocation5], 0
    // Predicated region
    $region2: #{tpu_custom_call.1} parent=1 // pred_check
      _
    $region3: #{tpu_custom_call.1} parent=1 // pred_check_branch
      %13 = sbr.rel (0) target = $region5
    $region4: #{tpu_custom_call.1} parent=1 // pred_region
      %s15 = ssub.s32 256, 256
      %16 = vsyncadd [#allocation4], %s15
      %s17 = sshll.u32 [#allocation3], 4
      %s18 = int_to_ptr.vmem [resolvable:$true] %s17
      %23 = dma.hbm_to_vmem [thread:$0]  %s0, 256, %s18, [#allocation4], 128, 128, 8
    $region5: #{tpu_custom_call.1} parent=1 // pred_fallthru
      _
    // Predicated region
    $region6: #{tpu_custom_call.1} parent=1 // pred_check
      _
    $region7: #{tpu_custom_call.1} parent=1 // pred_check_branch
      %25 = sbr.rel (0) target = $region9
    $region8: #{tpu_custom_call.1} parent=1 // pred_region
      %s27 = ssub.s32 256, 256
      %28 = vsyncadd [#allocation7], %s27
      %s29 = sshll.u32 [#allocation6], 4
      %s30 = int_to_ptr.vmem [resolvable:$true] %s29
      %35 = dma.hbm_to_vmem [thread:$0]  %s1, 256, %s30, [#allocation7], 128, 128, 8
    $region9: #{tpu_custom_call.1} parent=1 // pred_fallthru
      _
    // Predicated region
    $region10: #{tpu_custom_call.1} parent=1 // pred_check
      _
    $region11: #{tpu_custom_call.1} parent=1 // pred_check_branch
      %37 = sbr.rel (0) target = $region13
    $region12: #{tpu_custom_call.1} parent=1 // pred_region
      %s39 = ssub.s32 144, 144
      %40 = vsyncadd [#allocation7], %s39
      %s41 = sshll.u32 [#allocation8], 4
      %s42 = int_to_ptr.vmem [resolvable:$true] %s41
      %47 = dma.hbm_to_vmem [thread:$0]  %s2, 144, %s42, [#allocation7], 16, 16, 1
    $region13: #{tpu_custom_call.1} parent=1 // pred_fallthru
      _
    // Predicated region
    $region14: #{tpu_custom_call.1} parent=1 // pred_check
      _
    $region15: #{tpu_custom_call.1} parent=1 // pred_check_branch
      %49 = sbr.rel (0) target = $region17
    $region16: #{tpu_custom_call.1} parent=1 // pred_region
      _
    $region17: #{tpu_custom_call.1} parent=1 // pred_fallthru
      _
    // Predicated region
    $region18: #{tpu_custom_call.1} parent=1 // pred_check
      _
    $region19: #{tpu_custom_call.1} parent=1 // pred_check_branch
      %51 = sbr.rel (0) target = $region21
    $region20: #{tpu_custom_call.1} parent=1 // pred_region
      %52 = dma.done [#allocation4], 256
    $region21: #{tpu_custom_call.1} parent=1 // pred_fallthru
      _
    // Predicated region
    $region22: #{tpu_custom_call.1} parent=1 // pred_check
      _
    $region23: #{tpu_custom_call.1} parent=1 // pred_check_branch
      %54 = sbr.rel (0) target = $region25
    $region24: #{tpu_custom_call.1} parent=1 // pred_region
      %55 = dma.done [#allocation7], 256
    $region25: #{tpu_custom_call.1} parent=1 // pred_fallthru
      _
    // Predicated region
    $region26: #{tpu_custom_call.1} parent=1 // pred_check
      _
    $region27: #{tpu_custom_call.1} parent=1 // pred_check_branch
      %57 = sbr.rel (0) target = $region29
    $region28: #{tpu_custom_call.1} parent=1 // pred_region
      %58 = dma.done [#allocation7], 144
    $region29: #{tpu_custom_call.1} parent=1 // pred_fallthru
      _
    %p60 = scmp.eq.s32.totalorder 0, 0
    // Predicated region
    $region30: #{tpu_custom_call.1} parent=1 // pred_check
      %p61 = pneg %p60
    $region31: #{tpu_custom_call.1} parent=1 // pred_check_branch
      %63 = sbr.rel (%p61) target = $region33
    $region32: #{tpu_custom_call.1} parent=1 // pred_region
      %vm64 = vcmask 261120
      %65 = vst.msk [vmem:[#allocation2] sm:$0xff] %vm64, 0.0
      %vm66 = vcmask 254976
      %67 = vst.msk [vmem:[#allocation2 + $0x8] sm:$0x3] %vm66, 0.0
      %68 = vst.msk [vmem:[#allocation2 + $0x10] sm:$0xff] %vm64, 0.0
      %69 = vst.msk [vmem:[#allocation2 + $0x18] sm:$0x3] %vm66, 0.0
      %70 = vst.msk [vmem:[#allocation2 + $0x20] sm:$0xff] %vm64, 0.0
      %71 = vst.msk [vmem:[#allocation2 + $0x28] sm:$0x3] %vm66, 0.0
      %72 = vst.msk [vmem:[#allocation2 + $0x30] sm:$0xff] %vm64, 0.0
      %73 = vst.msk [vmem:[#allocation2 + $0x38] sm:$0x3] %vm66, 0.0
      %74 = vst.msk [vmem:[#allocation2 + $0x40] sm:$0xff] %vm64, 0.0
      %75 = vst.msk [vmem:[#allocation2 + $0x48] sm:$0x3] %vm66, 0.0
      %76 = vst.msk [vmem:[#allocation2 + $0x50] sm:$0xff] %vm64, 0.0
      %77 = vst.msk [vmem:[#allocation2 + $0x58] sm:$0x3] %vm66, 0.0
      %78 = vst.msk [vmem:[#allocation2 + $0x60] sm:$0xff] %vm64, 0.0
      %79 = vst.msk [vmem:[#allocation2 + $0x68] sm:$0x3] %vm66, 0.0
      %80 = vst.msk [vmem:[#allocation2 + $0x70] sm:$0xff] %vm64, 0.0
      %81 = vst.msk [vmem:[#allocation2 + $0x78] sm:$0x3] %vm66, 0.0
      %82 = vst.msk [vmem:[#allocation2 + $0x80] sm:$0xff] %vm64, 0.0
      %83 = vst.msk [vmem:[#allocation2 + $0x88] sm:$0x3] %vm66, 0.0
      %84 = vst.msk [vmem:[#allocation2 + $0x90] sm:$0xff] %vm64, 0.0
      %85 = vst.msk [vmem:[#allocation2 + $0x98] sm:$0x3] %vm66, 0.0
      %86 = vst.msk [vmem:[#allocation2 + $0xa0] sm:$0xff] %vm64, 0.0
      %87 = vst.msk [vmem:[#allocation2 + $0xa8] sm:$0x3] %vm66, 0.0
      %88 = vst.msk [vmem:[#allocation2 + $0xb0] sm:$0xff] %vm64, 0.0
      %89 = vst.msk [vmem:[#allocation2 + $0xb8] sm:$0x3] %vm66, 0.0
      %90 = vst.msk [vmem:[#allocation2 + $0xc0] sm:$0xff] %vm64, 0.0
      %91 = vst.msk [vmem:[#allocation2 + $0xc8] sm:$0x3] %vm66, 0.0
      %92 = vst.msk [vmem:[#allocation2 + $0xd0] sm:$0xff] %vm64, 0.0
      %93 = vst.msk [vmem:[#allocation2 + $0xd8] sm:$0x3] %vm66, 0.0
      %94 = vst.msk [vmem:[#allocation2 + $0xe0] sm:$0xff] %vm64, 0.0
      %95 = vst.msk [vmem:[#allocation2 + $0xe8] sm:$0x3] %vm66, 0.0
      %96 = vst.msk [vmem:[#allocation2 + $0xf0] sm:$0xff] %vm64, 0.0
      %97 = vst.msk [vmem:[#allocation2 + $0xf8] sm:$0x3] %vm66, 0.0
      %98 = vst.msk [vmem:[#allocation2 + $0x100] sm:$0xff] %vm64, 0.0
      %99 = vst.msk [vmem:[#allocation2 + $0x108] sm:$0x3] %vm66, 0.0
      %100 = vst.msk [vmem:[#allocation2 + $0x110] sm:$0xff] %vm64, 0.0
      %101 = vst.msk [vmem:[#allocation2 + $0x118] sm:$0x3] %vm66, 0.0
      %102 = vst.msk [vmem:[#allocation2 + $0x120] sm:$0xff] %vm64, 0.0
      %103 = vst.msk [vmem:[#allocation2 + $0x128] sm:$0x3] %vm66, 0.0
      %104 = vst.msk [vmem:[#allocation2 + $0x130] sm:$0xff] %vm64, 0.0
      %105 = vst.msk [vmem:[#allocation2 + $0x138] sm:$0x3] %vm66, 0.0
    $region33: #{tpu_custom_call.1} parent=1 // pred_fallthru
      _
    %v106 = vld [vmem:[#allocation3] sm:$0xff]
    %v107 = vld [vmem:[#allocation3 + $0x8] sm:$0xff]
    %v108 = vld [vmem:[#allocation6] sm:$0xff]
    %v109 = vld [vmem:[#allocation6 + $0x8] sm:$0xff]
    %v112 = vcombine.high %v106, %v106
    %v114 = vunpack.c.l.s4 1966171168
    %v115 = vunpack.c.0.s8 %v114
    %v116 = vlaneseq
    %v117 = vshrl.u32 %v116, 7
    %v118 = vsub.s32 %v115, %v117
    %v119 = vrot.slane %v106, %v118
    %v121 = vunpack.c.l.s4 1966171168
    %v122 = vunpack.c.0.s8 %v121
    %v123 = vlaneseq
    %v124 = vshrl.u32 %v123, 7
    %v125 = vsub.s32 %v122, %v124
    %v126 = vrot.slane %v112, %v125
    %v127 = vcombine.high %v119, %v119
    %v128 = vcombine.high %v126, %v126
    %v130 = vunpack.c.l.s4 1966171168
    %v131 = vunpack.c.0.s8 %v130
    %v132 = vlaneseq
    %v133 = vshrl.u32 %v132, 7
    %v134 = vsub.s32 %v131, %v133
    %v135 = vrot.slane %v119, %v134
    %v137 = vunpack.c.l.s4 1966171168
    %v138 = vunpack.c.0.s8 %v137
    %v139 = vlaneseq
    %v140 = vshrl.u32 %v139, 7
    %v141 = vsub.s32 %v138, %v140
    %v142 = vrot.slane %v126, %v141
    %v144 = vunpack.c.l.s4 1966171168
    %v145 = vunpack.c.0.s8 %v144
    %v146 = vlaneseq
    %v147 = vshrl.u32 %v146, 7
    %v148 = vsub.s32 %v145, %v147
    %v149 = vrot.slane %v127, %v148
    %v151 = vunpack.c.l.s4 1966171168
    %v152 = vunpack.c.0.s8 %v151
    %v153 = vlaneseq
    %v154 = vshrl.u32 %v153, 7
    %v155 = vsub.s32 %v152, %v154
    %v156 = vrot.slane %v128, %v155
    %v157 = vcombine.high %v135, %v135
    %v158 = vcombine.high %v142, %v142
    %v159 = vcombine.high %v149, %v149
    %v160 = vcombine.high %v156, %v156
    %v161 = vcombine.high %v107, %v107
    %v163 = vunpack.c.l.s4 1966171168
    %v164 = vunpack.c.0.s8 %v163
    %v165 = vlaneseq
    %v166 = vshrl.u32 %v165, 7
    %v167 = vsub.s32 %v164, %v166
    %v168 = vrot.slane %v107, %v167
    %v170 = vunpack.c.l.s4 1966171168
    %v171 = vunpack.c.0.s8 %v170
    %v172 = vlaneseq
    %v173 = vshrl.u32 %v172, 7
    %v174 = vsub.s32 %v171, %v173
    %v175 = vrot.slane %v161, %v174
    %v176 = vcombine.high %v168, %v168
    %v177 = vcombine.high %v175, %v175
    %v179 = vunpack.c.l.s4 1966171168
    %v180 = vunpack.c.0.s8 %v179
    %v181 = vlaneseq
    %v182 = vshrl.u32 %v181, 7
    %v183 = vsub.s32 %v180, %v182
    %v184 = vrot.slane %v168, %v183
    %v186 = vunpack.c.l.s4 1966171168
    %v187 = vunpack.c.0.s8 %v186
    %v188 = vlaneseq
    %v189 = vshrl.u32 %v188, 7
    %v190 = vsub.s32 %v187, %v189
    %v191 = vrot.slane %v175, %v190
    %v193 = vunpack.c.l.s4 1966171168
    %v194 = vunpack.c.0.s8 %v193
    %v195 = vlaneseq
    %v196 = vshrl.u32 %v195, 7
    %v197 = vsub.s32 %v194, %v196
    %v198 = vrot.slane %v176, %v197
    %v200 = vunpack.c.l.s4 1966171168
    %v201 = vunpack.c.0.s8 %v200
    %v202 = vlaneseq
    %v203 = vshrl.u32 %v202, 7
    %v204 = vsub.s32 %v201, %v203
    %v205 = vrot.slane %v177, %v204
    %v206 = vcombine.high %v184, %v184
    %v207 = vcombine.high %v191, %v191
    %v208 = vcombine.high %v198, %v198
    %v209 = vcombine.high %v205, %v205
    %v210 = vlaneseq
    %v211 = vshrl.u32 %v210, 7
    %v212 = vsub.s32 0, %v211
    %v213 = vrot.slane %v135, %v212
    %v214 = vlaneseq
    %v215 = vshrl.u32 %v214, 7
    %v216 = vsub.s32 0, %v215
    %v217 = vrot.slane %v149, %v216
    %v218 = vlaneseq
    %v219 = vshrl.u32 %v218, 7
    %v220 = vsub.s32 0, %v219
    %v221 = vrot.slane %v157, %v220
    %v222 = vlaneseq
    %v223 = vshrl.u32 %v222, 7
    %v224 = vsub.s32 0, %v223
    %v225 = vrot.slane %v159, %v224
    %v226 = vlaneseq
    %v227 = vshrl.u32 %v226, 7
    %v228 = vsub.s32 0, %v227
    %v229 = vrot.slane %v142, %v228
    %v230 = vlaneseq
    %v231 = vshrl.u32 %v230, 7
    %v232 = vsub.s32 0, %v231
    %v233 = vrot.slane %v156, %v232
    %v234 = vlaneseq
    %v235 = vshrl.u32 %v234, 7
    %v236 = vsub.s32 0, %v235
    %v237 = vrot.slane %v158, %v236
    %v238 = vlaneseq
    %v239 = vshrl.u32 %v238, 7
    %v240 = vsub.s32 0, %v239
    %v241 = vrot.slane %v160, %v240
    %v242 = vlaneseq
    %v243 = vshrl.u32 %v242, 7
    %v244 = vsub.s32 0, %v243
    %v245 = vrot.slane %v184, %v244
    %v246 = vlaneseq
    %v247 = vshrl.u32 %v246, 7
    %v248 = vsub.s32 0, %v247
    %v249 = vrot.slane %v198, %v248
    %v250 = vlaneseq
    %v251 = vshrl.u32 %v250, 7
    %v252 = vsub.s32 0, %v251
    %v253 = vrot.slane %v206, %v252
    %v254 = vlaneseq
    %v255 = vshrl.u32 %v254, 7
    %v256 = vsub.s32 0, %v255
    %v257 = vrot.slane %v208, %v256
    %v258 = vlaneseq
    %v259 = vshrl.u32 %v258, 7
    %v260 = vsub.s32 0, %v259
    %v261 = vrot.slane %v191, %v260
    %v262 = vlaneseq
    %v263 = vshrl.u32 %v262, 7
    %v264 = vsub.s32 0, %v263
    %v265 = vrot.slane %v205, %v264
    %v266 = vlaneseq
    %v267 = vshrl.u32 %v266, 7
    %v268 = vsub.s32 0, %v267
    %v269 = vrot.slane %v207, %v268
    %v270 = vlaneseq
    %v271 = vshrl.u32 %v270, 7
    %v272 = vsub.s32 0, %v271
    %v273 = vrot.slane %v209, %v272
    %v290 = vmul.f32 %v213, %v108
    %v291 = vmul.f32 %v217, %v108
    %v292 = vmul.f32 %v221, %v108
    %v293 = vmul.f32 %v225, %v108
    %v294 = vmul.f32 %v229, %v108
    %v295 = vmul.f32 %v233, %v108
    %v296 = vmul.f32 %v237, %v108
    %v297 = vmul.f32 %v241, %v108
    %v298 = vmul.f32 %v245, %v109
    %v299 = vmul.f32 %v249, %v109
    %v300 = vmul.f32 %v253, %v109
    %v301 = vmul.f32 %v257, %v109
    %v302 = vmul.f32 %v261, %v109
    %v303 = vmul.f32 %v265, %v109
    %v304 = vmul.f32 %v269, %v109
    %v305 = vmul.f32 %v273, %v109
    %v306 = vmax.f32 %v290, 0.0
    %v307 = vmax.f32 %v291, 0.0
    %v308 = vmax.f32 %v292, 0.0
    %v309 = vmax.f32 %v293, 0.0
    %v310 = vmax.f32 %v294, 0.0
    %v311 = vmax.f32 %v295, 0.0
    %v312 = vmax.f32 %v296, 0.0
    %v313 = vmax.f32 %v297, 0.0
    %v314 = vmax.f32 %v298, 0.0
    %v315 = vmax.f32 %v299, 0.0
    %v316 = vmax.f32 %v300, 0.0
    %v317 = vmax.f32 %v301, 0.0
    %v318 = vmax.f32 %v302, 0.0
    %v319 = vmax.f32 %v303, 0.0
    %v320 = vmax.f32 %v304, 0.0
    %v321 = vmax.f32 %v305, 0.0
    %s322 = scalar_lea.vmem [#allocation2], 16
    %vm323 = vcmask 261120
    %324 = vst.msk [vmem:[%s322 + $0x1] sm:$0xff] %vm323, %v306
    %325 = vst.msk [vmem:[%s322 + $0x11] sm:$0xff] %vm323, %v307
    %326 = vst.msk [vmem:[%s322 + $0x21] sm:$0xff] %vm323, %v308
    %327 = vst.msk [vmem:[%s322 + $0x31] sm:$0xff] %vm323, %v309
    %328 = vst.msk [vmem:[%s322 + $0x41] sm:$0xff] %vm323, %v310
    %329 = vst.msk [vmem:[%s322 + $0x51] sm:$0xff] %vm323, %v311
    %330 = vst.msk [vmem:[%s322 + $0x61] sm:$0xff] %vm323, %v312
    %331 = vst.msk [vmem:[%s322 + $0x71] sm:$0xff] %vm323, %v313
    %332 = vst.msk [vmem:[%s322 + $0xa1] sm:$0xff] %vm323, %v314
    %333 = vst.msk [vmem:[%s322 + $0xb1] sm:$0xff] %vm323, %v315
    %334 = vst.msk [vmem:[%s322 + $0xc1] sm:$0xff] %vm323, %v316
    %335 = vst.msk [vmem:[%s322 + $0xd1] sm:$0xff] %vm323, %v317
    %336 = vst.msk [vmem:[%s322 + $0xe1] sm:$0xff] %vm323, %v318
    %337 = vst.msk [vmem:[%s322 + $0xf1] sm:$0xff] %vm323, %v319
    %338 = vst.msk [vmem:[%s322 + $0x101] sm:$0xff] %vm323, %v320
    %339 = vst.msk [vmem:[%s322 + $0x111] sm:$0xff] %vm323, %v321
    %v340 = vld [vmem:[#allocation2] sm:$0xff]
    %v341 = vld [vmem:[#allocation2 + $0x10] sm:$0xff]
    %v342 = vld [vmem:[#allocation2 + $0x20] sm:$0xff]
    %v343 = vld [vmem:[#allocation2 + $0x30] sm:$0xff]
    %v344 = vld [vmem:[#allocation2 + $0x40] sm:$0xff]
    %v345 = vld [vmem:[#allocation2 + $0x50] sm:$0xff]
    %v346 = vld [vmem:[#allocation2 + $0x60] sm:$0xff]
    %v347 = vld [vmem:[#allocation2 + $0x70] sm:$0xff]
    %v348 = vld [vmem:[#allocation2 + $0xa0] sm:$0xff]
    %v349 = vld [vmem:[#allocation2 + $0xb0] sm:$0xff]
    %v350 = vld [vmem:[#allocation2 + $0xc0] sm:$0xff]
    %v351 = vld [vmem:[#allocation2 + $0xd0] sm:$0xff]
    %v352 = vld [vmem:[#allocation2 + $0xe0] sm:$0xff]
    %v353 = vld [vmem:[#allocation2 + $0xf0] sm:$0xff]
    %v354 = vld [vmem:[#allocation2 + $0x100] sm:$0xff]
    %v355 = vld [vmem:[#allocation2 + $0x110] sm:$0xff]
    %v356 = vpack.c.bf16 %v341, %v340
    %v357 = vpack.c.bf16 %v343, %v342
    %v358 = vpack.c.bf16 %v345, %v344
    %v359 = vpack.c.bf16 %v347, %v346
    %v360 = vpack.c.bf16 %v349, %v348
    %v361 = vpack.c.bf16 %v351, %v350
    %v362 = vpack.c.bf16 %v353, %v352
    %v363 = vpack.c.bf16 %v355, %v354
    %v364 = vld [vmem:[#allocation8] sm:$0x1]
    %v365 = vld [vmem:[#allocation2 + $0x1] sm:$0xff]
    %v366 = vld [vmem:[#allocation2 + $0x11] sm:$0xff]
    %v367 = vld [vmem:[#allocation2 + $0x21] sm:$0xff]
    %v368 = vld [vmem:[#allocation2 + $0x31] sm:$0xff]
    %v369 = vld [vmem:[#allocation2 + $0x41] sm:$0xff]
    %v370 = vld [vmem:[#allocation2 + $0x51] sm:$0xff]
    %v371 = vld [vmem:[#allocation2 + $0x61] sm:$0xff]
    %v372 = vld [vmem:[#allocation2 + $0x71] sm:$0xff]
    %v373 = vld [vmem:[#allocation2 + $0xa1] sm:$0xff]
    %v374 = vld [vmem:[#allocation2 + $0xb1] sm:$0xff]
    %v375 = vld [vmem:[#allocation2 + $0xc1] sm:$0xff]
    %v376 = vld [vmem:[#allocation2 + $0xd1] sm:$0xff]
    %v377 = vld [vmem:[#allocation2 + $0xe1] sm:$0xff]
    %v378 = vld [vmem:[#allocation2 + $0xf1] sm:$0xff]
    %v379 = vld [vmem:[#allocation2 + $0x101] sm:$0xff]
    %v380 = vld [vmem:[#allocation2 + $0x111] sm:$0xff]
    %v381 = vpack.c.bf16 %v366, %v365
    %v382 = vpack.c.bf16 %v368, %v367
    %v383 = vpack.c.bf16 %v370, %v369
    %v384 = vpack.c.bf16 %v372, %v371
    %v385 = vpack.c.bf16 %v374, %v373
    %v386 = vpack.c.bf16 %v376, %v375
    %v387 = vpack.c.bf16 %v378, %v377
    %v388 = vpack.c.bf16 %v380, %v379
    %s389 = scalar_lea.vmem [#allocation8], 1
    %v390 = vld [vmem:[%s389] sm:$0x1]
    %v392 = vsel %vm323, %v390, 0
    %v395 = vsel %vm323, %v381, 0
    %v398 = vsel %vm323, %v382, 0
    %v401 = vsel %vm323, %v383, 0
    %v404 = vsel %vm323, %v384, 0
    %v407 = vsel %vm323, %v385, 0
    %v410 = vsel %vm323, %v386, 0
    %v413 = vsel %vm323, %v387, 0
    %v416 = vsel %vm323, %v388, 0
    %418 = vmatprep.subr.bf16.mxu0 0
    %419 = vmatpush1.bf16.xpose.msra.mxu0 %v416
    %420 = vmatprep.subr.bf16.mxu0 0
    %421 = vmatpush1.bf16.xpose.msra.mxu0 %v413
    %422 = vmatprep.subr.bf16.mxu0 0
    %423 = vmatpush1.bf16.xpose.msra.mxu0 %v410
    %424 = vmatprep.subr.bf16.mxu0 0
    %425 = vmatpush1.bf16.xpose.msra.mxu0 %v407
    %426 = vmatprep.subr.bf16.mxu0 0
    %427 = vmatpush1.bf16.xpose.msra.mxu0 %v404
    %428 = vmatprep.subr.bf16.mxu0 0
    %429 = vmatpush1.bf16.xpose.msra.mxu0 %v401
    %430 = vmatprep.subr.bf16.mxu0 0
    %431 = vmatpush1.bf16.xpose.msra.mxu0 %v398
    %432 = vmatprep.subr.bf16.mxu0 0
    %433 = vmatpush1.bf16.xpose.msra.mxu0 %v395
    %434 = vmatprep.subr.bf16.mxu0 0
    %435 = vmatpush2.bf16.xpose.msra.mxu0 0
    %436 = vmatprep.subr.bf16.mxu0 0
    %437 = vmatpush2.bf16.xpose.msra.mxu0 0
    %438 = vmatprep.subr.bf16.mxu0 0
    %439 = vmatpush2.bf16.xpose.msra.mxu0 0
    %440 = vmatprep.subr.bf16.mxu0 0
    %441 = vmatpush2.bf16.xpose.msra.mxu0 0
    %442 = vmatprep.subr.bf16.mxu0 0
    %443 = vmatpush2.bf16.xpose.msra.mxu0 0
    %444 = vmatprep.subr.bf16.mxu0 0
    %445 = vmatpush2.bf16.xpose.msra.mxu0 0
    %446 = vmatprep.subr.bf16.mxu0 0
    %447 = vmatpush2.bf16.xpose.msra.mxu0 0
    %448 = vmatprep.subr.bf16.mxu0 0
    %449 = vmatpush2.bf16.xpose.msra.mxu0 0
    %450 = vmatprep.mubr.bf16.mxu0 0
    %451 = vmatmul.mubr.bf16.gmra.mxu0 %v392
    %v452 = vpop.f32.mrf.mxu0
    %v453 = vadd.f32 0.0, %v452
    %v454 = vpop.f32.mrf.mxu0
    %v455 = vpop.f32.mrf.mxu0
    %v456 = vpop.f32.mrf.mxu0
    %457 = vdwg.mxu0
    %v459 = vsel %vm323, %v364, 0
    %v462 = vsel %vm323, %v356, 0
    %v465 = vsel %vm323, %v357, 0
    %v468 = vsel %vm323, %v358, 0
    %v471 = vsel %vm323, %v359, 0
    %v474 = vsel %vm323, %v360, 0
    %v477 = vsel %vm323, %v361, 0
    %v480 = vsel %vm323, %v362, 0
    %v483 = vsel %vm323, %v363, 0
    %485 = vmatprep.subr.bf16.mxu0 0
    %486 = vmatpush1.bf16.xpose.msra.mxu0 %v483
    %487 = vmatprep.subr.bf16.mxu0 0
    %488 = vmatpush1.bf16.xpose.msra.mxu0 %v480
    %489 = vmatprep.subr.bf16.mxu0 0
    %490 = vmatpush1.bf16.xpose.msra.mxu0 %v477
    %491 = vmatprep.subr.bf16.mxu0 0
    %492 = vmatpush1.bf16.xpose.msra.mxu0 %v474
    %493 = vmatprep.subr.bf16.mxu0 0
    %494 = vmatpush1.bf16.xpose.msra.mxu0 %v471
    %495 = vmatprep.subr.bf16.mxu0 0
    %496 = vmatpush1.bf16.xpose.msra.mxu0 %v468
    %497 = vmatprep.subr.bf16.mxu0 0
    %498 = vmatpush1.bf16.xpose.msra.mxu0 %v465
    %499 = vmatprep.subr.bf16.mxu0 0
    %500 = vmatpush1.bf16.xpose.msra.mxu0 %v462
    %501 = vmatprep.subr.bf16.mxu0 0
    %502 = vmatpush2.bf16.xpose.msra.mxu0 0
    %503 = vmatprep.subr.bf16.mxu0 0
    %504 = vmatpush2.bf16.xpose.msra.mxu0 0
    %505 = vmatprep.subr.bf16.mxu0 0
    %506 = vmatpush2.bf16.xpose.msra.mxu0 0
    %507 = vmatprep.subr.bf16.mxu0 0
    %508 = vmatpush2.bf16.xpose.msra.mxu0 0
    %509 = vmatprep.subr.bf16.mxu0 0
    %510 = vmatpush2.bf16.xpose.msra.mxu0 0
    %511 = vmatprep.subr.bf16.mxu0 0
    %512 = vmatpush2.bf16.xpose.msra.mxu0 0
    %513 = vmatprep.subr.bf16.mxu0 0
    %514 = vmatpush2.bf16.xpose.msra.mxu0 0
    %515 = vmatprep.subr.bf16.mxu0 0
    %516 = vmatpush2.bf16.xpose.msra.mxu0 0
    %517 = vmatprep.mubr.bf16.mxu0 0
    %518 = vmatmul.mubr.bf16.gmra.mxu0 %v459
    %v519 = vpop.f32.mrf.mxu0
    %v520 = vadd.f32 %v453, %v519
    %v521 = vpop.f32.mrf.mxu0
    %v522 = vpop.f32.mrf.mxu0
    %v523 = vpop.f32.mrf.mxu0
    %524 = vdwg.mxu0
    %v525 = vld [vmem:[#allocation2 + $0x2] sm:$0xff]
    %v526 = vld [vmem:[#allocation2 + $0x12] sm:$0xff]
    %v527 = vld [vmem:[#allocation2 + $0x22] sm:$0xff]
    %v528 = vld [vmem:[#allocation2 + $0x32] sm:$0xff]
    %v529 = vld [vmem:[#allocation2 + $0x42] sm:$0xff]
    %v530 = vld [vmem:[#allocation2 + $0x52] sm:$0xff]
    %v531 = vld [vmem:[#allocation2 + $0x62] sm:$0xff]
    %v532 = vld [vmem:[#allocation2 + $0x72] sm:$0xff]
    %v533 = vld [vmem:[#allocation2 + $0xa2] sm:$0xff]
    %v534 = vld [vmem:[#allocation2 + $0xb2] sm:$0xff]
    %v535 = vld [vmem:[#allocation2 + $0xc2] sm:$0xff]
    %v536 = vld [vmem:[#allocation2 + $0xd2] sm:$0xff]
    %v537 = vld [vmem:[#allocation2 + $0xe2] sm:$0xff]
    %v538 = vld [vmem:[#allocation2 + $0xf2] sm:$0xff]
    %v539 = vld [vmem:[#allocation2 + $0x102] sm:$0xff]
    %v540 = vld [vmem:[#allocation2 + $0x112] sm:$0xff]
    %v541 = vpack.c.bf16 %v526, %v525
    %v542 = vpack.c.bf16 %v528, %v527
    %v543 = vpack.c.bf16 %v530, %v529
    %v544 = vpack.c.bf16 %v532, %v531
    %v545 = vpack.c.bf16 %v534, %v533
    %v546 = vpack.c.bf16 %v536, %v535
    %v547 = vpack.c.bf16 %v538, %v537
    %v548 = vpack.c.bf16 %v540, %v539
    %s549 = scalar_lea.vmem [#allocation8], 2
    %v550 = vld [vmem:[%s549] sm:$0x1]
    %v552 = vsel %vm323, %v550, 0
    %v555 = vsel %vm323, %v541, 0
    %v558 = vsel %vm323, %v542, 0
    %v561 = vsel %vm323, %v543, 0
    %v564 = vsel %vm323, %v544, 0
    %v567 = vsel %vm323, %v545, 0
    %v570 = vsel %vm323, %v546, 0
    %v573 = vsel %vm323, %v547, 0
    %v576 = vsel %vm323, %v548, 0
    %578 = vmatprep.subr.bf16.mxu0 0
    %579 = vmatpush1.bf16.xpose.msra.mxu0 %v576
    %580 = vmatprep.subr.bf16.mxu0 0
    %581 = vmatpush1.bf16.xpose.msra.mxu0 %v573
    %582 = vmatprep.subr.bf16.mxu0 0
    %583 = vmatpush1.bf16.xpose.msra.mxu0 %v570
    %584 = vmatprep.subr.bf16.mxu0 0
    %585 = vmatpush1.bf16.xpose.msra.mxu0 %v567
    %586 = vmatprep.subr.bf16.mxu0 0
    %587 = vmatpush1.bf16.xpose.msra.mxu0 %v564
    %588 = vmatprep.subr.bf16.mxu0 0
    %589 = vmatpush1.bf16.xpose.msra.mxu0 %v561
    %590 = vmatprep.subr.bf16.mxu0 0
    %591 = vmatpush1.bf16.xpose.msra.mxu0 %v558
    %592 = vmatprep.subr.bf16.mxu0 0
    %593 = vmatpush1.bf16.xpose.msra.mxu0 %v555
    %594 = vmatprep.subr.bf16.mxu0 0
    %595 = vmatpush2.bf16.xpose.msra.mxu0 0
    %596 = vmatprep.subr.bf16.mxu0 0
    %597 = vmatpush2.bf16.xpose.msra.mxu0 0
    %598 = vmatprep.subr.bf16.mxu0 0
    %599 = vmatpush2.bf16.xpose.msra.mxu0 0
    %600 = vmatprep.subr.bf16.mxu0 0
    %601 = vmatpush2.bf16.xpose.msra.mxu0 0
    %602 = vmatprep.subr.bf16.mxu0 0
    %603 = vmatpush2.bf16.xpose.msra.mxu0 0
    %604 = vmatprep.subr.bf16.mxu0 0
    %605 = vmatpush2.bf16.xpose.msra.mxu0 0
    %606 = vmatprep.subr.bf16.mxu0 0
    %607 = vmatpush2.bf16.xpose.msra.mxu0 0
    %608 = vmatprep.subr.bf16.mxu0 0
    %609 = vmatpush2.bf16.xpose.msra.mxu0 0
    %610 = vmatprep.mubr.bf16.mxu0 0
    %611 = vmatmul.mubr.bf16.gmra.mxu0 %v552
    %v612 = vpop.f32.mrf.mxu0
    %v613 = vadd.f32 0.0, %v612
    %v614 = vpop.f32.mrf.mxu0
    %v615 = vpop.f32.mrf.mxu0
    %v616 = vpop.f32.mrf.mxu0
    %617 = vdwg.mxu0
    %v618 = vadd.f32 %v520, %v613
    %v619 = vld [vmem:[%s322] sm:$0xff]
    %v620 = vld [vmem:[%s322 + $0x10] sm:$0xff]
    %v621 = vld [vmem:[%s322 + $0x20] sm:$0xff]
    %v622 = vld [vmem:[%s322 + $0x30] sm:$0xff]
    %v623 = vld [vmem:[%s322 + $0x40] sm:$0xff]
    %v624 = vld [vmem:[%s322 + $0x50] sm:$0xff]
    %v625 = vld [vmem:[%s322 + $0x60] sm:$0xff]
    %v626 = vld [vmem:[%s322 + $0x70] sm:$0xff]
    %v627 = vld [vmem:[%s322 + $0xa0] sm:$0xff]
    %v628 = vld [vmem:[%s322 + $0xb0] sm:$0xff]
    %v629 = vld [vmem:[%s322 + $0xc0] sm:$0xff]
    %v630 = vld [vmem:[%s322 + $0xd0] sm:$0xff]
    %v631 = vld [vmem:[%s322 + $0xe0] sm:$0xff]
    %v632 = vld [vmem:[%s322 + $0xf0] sm:$0xff]
    %v633 = vld [vmem:[%s322 + $0x100] sm:$0xff]
    %v634 = vld [vmem:[%s322 + $0x110] sm:$0xff]
    %v635 = vpack.c.bf16 %v620, %v619
    %v636 = vpack.c.bf16 %v622, %v621
    %v637 = vpack.c.bf16 %v624, %v623
    %v638 = vpack.c.bf16 %v626, %v625
    %v639 = vpack.c.bf16 %v628, %v627
    %v640 = vpack.c.bf16 %v630, %v629
    %v641 = vpack.c.bf16 %v632, %v631
    %v642 = vpack.c.bf16 %v634, %v633
    %s643 = scalar_lea.vmem [#allocation8], 3
    %v644 = vld [vmem:[%s643] sm:$0x1]
    %v646 = vsel %vm323, %v644, 0
    %v649 = vsel %vm323, %v635, 0
    %v652 = vsel %vm323, %v636, 0
    %v655 = vsel %vm323, %v637, 0
    %v658 = vsel %vm323, %v638, 0
    %v661 = vsel %vm323, %v639, 0
    %v664 = vsel %vm323, %v640, 0
    %v667 = vsel %vm323, %v641, 0
    %v670 = vsel %vm323, %v642, 0
    %672 = vmatprep.subr.bf16.mxu0 0
    %673 = vmatpush1.bf16.xpose.msra.mxu0 %v670
    %674 = vmatprep.subr.bf16.mxu0 0
    %675 = vmatpush1.bf16.xpose.msra.mxu0 %v667
    %676 = vmatprep.subr.bf16.mxu0 0
    %677 = vmatpush1.bf16.xpose.msra.mxu0 %v664
    %678 = vmatprep.subr.bf16.mxu0 0
    %679 = vmatpush1.bf16.xpose.msra.mxu0 %v661
    %680 = vmatprep.subr.bf16.mxu0 0
    %681 = vmatpush1.bf16.xpose.msra.mxu0 %v658
    %682 = vmatprep.subr.bf16.mxu0 0
    %683 = vmatpush1.bf16.xpose.msra.mxu0 %v655
    %684 = vmatprep.subr.bf16.mxu0 0
    %685 = vmatpush1.bf16.xpose.msra.mxu0 %v652
    %686 = vmatprep.subr.bf16.mxu0 0
    %687 = vmatpush1.bf16.xpose.msra.mxu0 %v649
    %688 = vmatprep.subr.bf16.mxu0 0
    %689 = vmatpush2.bf16.xpose.msra.mxu0 0
    %690 = vmatprep.subr.bf16.mxu0 0
    %691 = vmatpush2.bf16.xpose.msra.mxu0 0
    %692 = vmatprep.subr.bf16.mxu0 0
    %693 = vmatpush2.bf16.xpose.msra.mxu0 0
    %694 = vmatprep.subr.bf16.mxu0 0
    %695 = vmatpush2.bf16.xpose.msra.mxu0 0
    %696 = vmatprep.subr.bf16.mxu0 0
    %697 = vmatpush2.bf16.xpose.msra.mxu0 0
    %698 = vmatprep.subr.bf16.mxu0 0
    %699 = vmatpush2.bf16.xpose.msra.mxu0 0
    %700 = vmatprep.subr.bf16.mxu0 0
    %701 = vmatpush2.bf16.xpose.msra.mxu0 0
    %702 = vmatprep.subr.bf16.mxu0 0
    %703 = vmatpush2.bf16.xpose.msra.mxu0 0
    %704 = vmatprep.mubr.bf16.mxu0 0
    %705 = vmatmul.mubr.bf16.gmra.mxu0 %v646
    %v706 = vpop.f32.mrf.mxu0
    %v707 = vadd.f32 0.0, %v706
    %v708 = vpop.f32.mrf.mxu0
    %v709 = vpop.f32.mrf.mxu0
    %v710 = vpop.f32.mrf.mxu0
    %711 = vdwg.mxu0
    %v712 = vadd.f32 %v618, %v707
    %v713 = vld [vmem:[%s322 + $0x1] sm:$0xff]
    %v714 = vld [vmem:[%s322 + $0x11] sm:$0xff]
    %v715 = vld [vmem:[%s322 + $0x21] sm:$0xff]
    %v716 = vld [vmem:[%s322 + $0x31] sm:$0xff]
    %v717 = vld [vmem:[%s322 + $0x41] sm:$0xff]
    %v718 = vld [vmem:[%s322 + $0x51] sm:$0xff]
    %v719 = vld [vmem:[%s322 + $0x61] sm:$0xff]
    %v720 = vld [vmem:[%s322 + $0x71] sm:$0xff]
    %v721 = vld [vmem:[%s322 + $0xa1] sm:$0xff]
    %v722 = vld [vmem:[%s322 + $0xb1] sm:$0xff]
    %v723 = vld [vmem:[%s322 + $0xc1] sm:$0xff]
    %v724 = vld [vmem:[%s322 + $0xd1] sm:$0xff]
    %v725 = vld [vmem:[%s322 + $0xe1] sm:$0xff]
    %v726 = vld [vmem:[%s322 + $0xf1] sm:$0xff]
    %v727 = vld [vmem:[%s322 + $0x101] sm:$0xff]
    %v728 = vld [vmem:[%s322 + $0x111] sm:$0xff]
    %v729 = vpack.c.bf16 %v714, %v713
    %v730 = vpack.c.bf16 %v716, %v715
    %v731 = vpack.c.bf16 %v718, %v717
    %v732 = vpack.c.bf16 %v720, %v719
    %v733 = vpack.c.bf16 %v722, %v721
    %v734 = vpack.c.bf16 %v724, %v723
    %v735 = vpack.c.bf16 %v726, %v725
    %v736 = vpack.c.bf16 %v728, %v727
    %s737 = scalar_lea.vmem [#allocation8], 4
    %v738 = vld [vmem:[%s737] sm:$0x1]
    %v740 = vsel %vm323, %v738, 0
    %v743 = vsel %vm323, %v729, 0
    %v746 = vsel %vm323, %v730, 0
    %v749 = vsel %vm323, %v731, 0
    %v752 = vsel %vm323, %v732, 0
    %v755 = vsel %vm323, %v733, 0
    %v758 = vsel %vm323, %v734, 0
    %v761 = vsel %vm323, %v735, 0
    %v764 = vsel %vm323, %v736, 0
    %766 = vmatprep.subr.bf16.mxu0 0
    %767 = vmatpush1.bf16.xpose.msra.mxu0 %v764
    %768 = vmatprep.subr.bf16.mxu0 0
    %769 = vmatpush1.bf16.xpose.msra.mxu0 %v761
    %770 = vmatprep.subr.bf16.mxu0 0
    %771 = vmatpush1.bf16.xpose.msra.mxu0 %v758
    %772 = vmatprep.subr.bf16.mxu0 0
    %773 = vmatpush1.bf16.xpose.msra.mxu0 %v755
    %774 = vmatprep.subr.bf16.mxu0 0
    %775 = vmatpush1.bf16.xpose.msra.mxu0 %v752
    %776 = vmatprep.subr.bf16.mxu0 0
    %777 = vmatpush1.bf16.xpose.msra.mxu0 %v749
    %778 = vmatprep.subr.bf16.mxu0 0
    %779 = vmatpush1.bf16.xpose.msra.mxu0 %v746
    %780 = vmatprep.subr.bf16.mxu0 0
    %781 = vmatpush1.bf16.xpose.msra.mxu0 %v743
    %782 = vmatprep.subr.bf16.mxu0 0
    %783 = vmatpush2.bf16.xpose.msra.mxu0 0
    %784 = vmatprep.subr.bf16.mxu0 0
    %785 = vmatpush2.bf16.xpose.msra.mxu0 0
    %786 = vmatprep.subr.bf16.mxu0 0
    %787 = vmatpush2.bf16.xpose.msra.mxu0 0
    %788 = vmatprep.subr.bf16.mxu0 0
    %789 = vmatpush2.bf16.xpose.msra.mxu0 0
    %790 = vmatprep.subr.bf16.mxu0 0
    %791 = vmatpush2.bf16.xpose.msra.mxu0 0
    %792 = vmatprep.subr.bf16.mxu0 0
    %793 = vmatpush2.bf16.xpose.msra.mxu0 0
    %794 = vmatprep.subr.bf16.mxu0 0
    %795 = vmatpush2.bf16.xpose.msra.mxu0 0
    %796 = vmatprep.subr.bf16.mxu0 0
    %797 = vmatpush2.bf16.xpose.msra.mxu0 0
    %798 = vmatprep.mubr.bf16.mxu0 0
    %799 = vmatmul.mubr.bf16.gmra.mxu0 %v740
    %v800 = vpop.f32.mrf.mxu0
    %v801 = vadd.f32 0.0, %v800
    %v802 = vpop.f32.mrf.mxu0
    %v803 = vpop.f32.mrf.mxu0
    %v804 = vpop.f32.mrf.mxu0
    %805 = vdwg.mxu0
    %v806 = vadd.f32 %v712, %v801
    %v807 = vld [vmem:[%s322 + $0x2] sm:$0xff]
    %v808 = vld [vmem:[%s322 + $0x12] sm:$0xff]
    %v809 = vld [vmem:[%s322 + $0x22] sm:$0xff]
    %v810 = vld [vmem:[%s322 + $0x32] sm:$0xff]
    %v811 = vld [vmem:[%s322 + $0x42] sm:$0xff]
    %v812 = vld [vmem:[%s322 + $0x52] sm:$0xff]
    %v813 = vld [vmem:[%s322 + $0x62] sm:$0xff]
    %v814 = vld [vmem:[%s322 + $0x72] sm:$0xff]
    %v815 = vld [vmem:[%s322 + $0xa2] sm:$0xff]
    %v816 = vld [vmem:[%s322 + $0xb2] sm:$0xff]
    %v817 = vld [vmem:[%s322 + $0xc2] sm:$0xff]
    %v818 = vld [vmem:[%s322 + $0xd2] sm:$0xff]
    %v819 = vld [vmem:[%s322 + $0xe2] sm:$0xff]
    %v820 = vld [vmem:[%s322 + $0xf2] sm:$0xff]
    %v821 = vld [vmem:[%s322 + $0x102] sm:$0xff]
    %v822 = vld [vmem:[%s322 + $0x112] sm:$0xff]
    %v823 = vpack.c.bf16 %v808, %v807
    %v824 = vpack.c.bf16 %v810, %v809
    %v825 = vpack.c.bf16 %v812, %v811
    %v826 = vpack.c.bf16 %v814, %v813
    %v827 = vpack.c.bf16 %v816, %v815
    %v828 = vpack.c.bf16 %v818, %v817
    %v829 = vpack.c.bf16 %v820, %v819
    %v830 = vpack.c.bf16 %v822, %v821
    %s831 = scalar_lea.vmem [#allocation8], 5
    %v832 = vld [vmem:[%s831] sm:$0x1]
    %v834 = vsel %vm323, %v832, 0
    %v837 = vsel %vm323, %v823, 0
    %v840 = vsel %vm323, %v824, 0
    %v843 = vsel %vm323, %v825, 0
    %v846 = vsel %vm323, %v826, 0
    %v849 = vsel %vm323, %v827, 0
    %v852 = vsel %vm323, %v828, 0
    %v855 = vsel %vm323, %v829, 0
    %v858 = vsel %vm323, %v830, 0
    %860 = vmatprep.subr.bf16.mxu0 0
    %861 = vmatpush1.bf16.xpose.msra.mxu0 %v858
    %862 = vmatprep.subr.bf16.mxu0 0
    %863 = vmatpush1.bf16.xpose.msra.mxu0 %v855
    %864 = vmatprep.subr.bf16.mxu0 0
    %865 = vmatpush1.bf16.xpose.msra.mxu0 %v852
    %866 = vmatprep.subr.bf16.mxu0 0
    %867 = vmatpush1.bf16.xpose.msra.mxu0 %v849
    %868 = vmatprep.subr.bf16.mxu0 0
    %869 = vmatpush1.bf16.xpose.msra.mxu0 %v846
    %870 = vmatprep.subr.bf16.mxu0 0
    %871 = vmatpush1.bf16.xpose.msra.mxu0 %v843
    %872 = vmatprep.subr.bf16.mxu0 0
    %873 = vmatpush1.bf16.xpose.msra.mxu0 %v840
    %874 = vmatprep.subr.bf16.mxu0 0
    %875 = vmatpush1.bf16.xpose.msra.mxu0 %v837
    %876 = vmatprep.subr.bf16.mxu0 0
    %877 = vmatpush2.bf16.xpose.msra.mxu0 0
    %878 = vmatprep.subr.bf16.mxu0 0
    %879 = vmatpush2.bf16.xpose.msra.mxu0 0
    %880 = vmatprep.subr.bf16.mxu0 0
    %881 = vmatpush2.bf16.xpose.msra.mxu0 0
    %882 = vmatprep.subr.bf16.mxu0 0
    %883 = vmatpush2.bf16.xpose.msra.mxu0 0
    %884 = vmatprep.subr.bf16.mxu0 0
    %885 = vmatpush2.bf16.xpose.msra.mxu0 0
    %886 = vmatprep.subr.bf16.mxu0 0
    %887 = vmatpush2.bf16.xpose.msra.mxu0 0
    %888 = vmatprep.subr.bf16.mxu0 0
    %889 = vmatpush2.bf16.xpose.msra.mxu0 0
    %890 = vmatprep.subr.bf16.mxu0 0
    %891 = vmatpush2.bf16.xpose.msra.mxu0 0
    %892 = vmatprep.mubr.bf16.mxu0 0
    %893 = vmatmul.mubr.bf16.gmra.mxu0 %v834
    %v894 = vpop.f32.mrf.mxu0
    %v895 = vadd.f32 0.0, %v894
    %v896 = vpop.f32.mrf.mxu0
    %v897 = vpop.f32.mrf.mxu0
    %v898 = vpop.f32.mrf.mxu0
    %899 = vdwg.mxu0
    %v900 = vadd.f32 %v806, %v895
    %s901 = scalar_lea.vmem [#allocation2], 32
    %v902 = vld [vmem:[%s901] sm:$0xff]
    %v903 = vld [vmem:[%s901 + $0x10] sm:$0xff]
    %v904 = vld [vmem:[%s901 + $0x20] sm:$0xff]
    %v905 = vld [vmem:[%s901 + $0x30] sm:$0xff]
    %v906 = vld [vmem:[%s901 + $0x40] sm:$0xff]
    %v907 = vld [vmem:[%s901 + $0x50] sm:$0xff]
    %v908 = vld [vmem:[%s901 + $0x60] sm:$0xff]
    %v909 = vld [vmem:[%s901 + $0x70] sm:$0xff]
    %v910 = vld [vmem:[%s901 + $0xa0] sm:$0xff]
    %v911 = vld [vmem:[%s901 + $0xb0] sm:$0xff]
    %v912 = vld [vmem:[%s901 + $0xc0] sm:$0xff]
    %v913 = vld [vmem:[%s901 + $0xd0] sm:$0xff]
    %v914 = vld [vmem:[%s901 + $0xe0] sm:$0xff]
    %v915 = vld [vmem:[%s901 + $0xf0] sm:$0xff]
    %v916 = vld [vmem:[%s901 + $0x100] sm:$0xff]
    %v917 = vld [vmem:[%s901 + $0x110] sm:$0xff]
    %v918 = vpack.c.bf16 %v903, %v902
    %v919 = vpack.c.bf16 %v905, %v904
    %v920 = vpack.c.bf16 %v907, %v906
    %v921 = vpack.c.bf16 %v909, %v908
    %v922 = vpack.c.bf16 %v911, %v910
    %v923 = vpack.c.bf16 %v913, %v912
    %v924 = vpack.c.bf16 %v915, %v914
    %v925 = vpack.c.bf16 %v917, %v916
    %s926 = scalar_lea.vmem [#allocation8], 6
    %v927 = vld [vmem:[%s926] sm:$0x1]
    %v929 = vsel %vm323, %v927, 0
    %v932 = vsel %vm323, %v918, 0
    %v935 = vsel %vm323, %v919, 0
    %v938 = vsel %vm323, %v920, 0
    %v941 = vsel %vm323, %v921, 0
    %v944 = vsel %vm323, %v922, 0
    %v947 = vsel %vm323, %v923, 0
    %v950 = vsel %vm323, %v924, 0
    %v953 = vsel %vm323, %v925, 0
    %955 = vmatprep.subr.bf16.mxu0 0
    %956 = vmatpush1.bf16.xpose.msra.mxu0 %v953
    %957 = vmatprep.subr.bf16.mxu0 0
    %958 = vmatpush1.bf16.xpose.msra.mxu0 %v950
    %959 = vmatprep.subr.bf16.mxu0 0
    %960 = vmatpush1.bf16.xpose.msra.mxu0 %v947
    %961 = vmatprep.subr.bf16.mxu0 0
    %962 = vmatpush1.bf16.xpose.msra.mxu0 %v944
    %963 = vmatprep.subr.bf16.mxu0 0
    %964 = vmatpush1.bf16.xpose.msra.mxu0 %v941
    %965 = vmatprep.subr.bf16.mxu0 0
    %966 = vmatpush1.bf16.xpose.msra.mxu0 %v938
    %967 = vmatprep.subr.bf16.mxu0 0
    %968 = vmatpush1.bf16.xpose.msra.mxu0 %v935
    %969 = vmatprep.subr.bf16.mxu0 0
    %970 = vmatpush1.bf16.xpose.msra.mxu0 %v932
    %971 = vmatprep.subr.bf16.mxu0 0
    %972 = vmatpush2.bf16.xpose.msra.mxu0 0
    %973 = vmatprep.subr.bf16.mxu0 0
    %974 = vmatpush2.bf16.xpose.msra.mxu0 0
    %975 = vmatprep.subr.bf16.mxu0 0
    %976 = vmatpush2.bf16.xpose.msra.mxu0 0
    %977 = vmatprep.subr.bf16.mxu0 0
    %978 = vmatpush2.bf16.xpose.msra.mxu0 0
    %979 = vmatprep.subr.bf16.mxu0 0
    %980 = vmatpush2.bf16.xpose.msra.mxu0 0
    %981 = vmatprep.subr.bf16.mxu0 0
    %982 = vmatpush2.bf16.xpose.msra.mxu0 0
    %983 = vmatprep.subr.bf16.mxu0 0
    %984 = vmatpush2.bf16.xpose.msra.mxu0 0
    %985 = vmatprep.subr.bf16.mxu0 0
    %986 = vmatpush2.bf16.xpose.msra.mxu0 0
    %987 = vmatprep.mubr.bf16.mxu0 0
    %988 = vmatmul.mubr.bf16.gmra.mxu0 %v929
    %v989 = vpop.f32.mrf.mxu0
    %v990 = vadd.f32 0.0, %v989
    %v991 = vpop.f32.mrf.mxu0
    %v992 = vpop.f32.mrf.mxu0
    %v993 = vpop.f32.mrf.mxu0
    %994 = vdwg.mxu0
    %v995 = vadd.f32 %v900, %v990
    %v996 = vld [vmem:[%s901 + $0x1] sm:$0xff]
    %v997 = vld [vmem:[%s901 + $0x11] sm:$0xff]
    %v998 = vld [vmem:[%s901 + $0x21] sm:$0xff]
    %v999 = vld [vmem:[%s901 + $0x31] sm:$0xff]
    %v1000 = vld [vmem:[%s901 + $0x41] sm:$0xff]
    %v1001 = vld [vmem:[%s901 + $0x51] sm:$0xff]
    %v1002 = vld [vmem:[%s901 + $0x61] sm:$0xff]
    %v1003 = vld [vmem:[%s901 + $0x71] sm:$0xff]
    %v1004 = vld [vmem:[%s901 + $0xa1] sm:$0xff]
    %v1005 = vld [vmem:[%s901 + $0xb1] sm:$0xff]
    %v1006 = vld [vmem:[%s901 + $0xc1] sm:$0xff]
    %v1007 = vld [vmem:[%s901 + $0xd1] sm:$0xff]
    %v1008 = vld [vmem:[%s901 + $0xe1] sm:$0xff]
    %v1009 = vld [vmem:[%s901 + $0xf1] sm:$0xff]
    %v1010 = vld [vmem:[%s901 + $0x101] sm:$0xff]
    %v1011 = vld [vmem:[%s901 + $0x111] sm:$0xff]
    %v1012 = vpack.c.bf16 %v997, %v996
    %v1013 = vpack.c.bf16 %v999, %v998
    %v1014 = vpack.c.bf16 %v1001, %v1000
    %v1015 = vpack.c.bf16 %v1003, %v1002
    %v1016 = vpack.c.bf16 %v1005, %v1004
    %v1017 = vpack.c.bf16 %v1007, %v1006
    %v1018 = vpack.c.bf16 %v1009, %v1008
    %v1019 = vpack.c.bf16 %v1011, %v1010
    %s1020 = scalar_lea.vmem [#allocation8], 7
    %v1021 = vld [vmem:[%s1020] sm:$0x1]
    %v1023 = vsel %vm323, %v1021, 0
    %v1026 = vsel %vm323, %v1012, 0
    %v1029 = vsel %vm323, %v1013, 0
    %v1032 = vsel %vm323, %v1014, 0
    %v1035 = vsel %vm323, %v1015, 0
    %v1038 = vsel %vm323, %v1016, 0
    %v1041 = vsel %vm323, %v1017, 0
    %v1044 = vsel %vm323, %v1018, 0
    %v1047 = vsel %vm323, %v1019, 0
    %1049 = vmatprep.subr.bf16.mxu0 0
    %1050 = vmatpush1.bf16.xpose.msra.mxu0 %v1047
    %1051 = vmatprep.subr.bf16.mxu0 0
    %1052 = vmatpush1.bf16.xpose.msra.mxu0 %v1044
    %1053 = vmatprep.subr.bf16.mxu0 0
    %1054 = vmatpush1.bf16.xpose.msra.mxu0 %v1041
    %1055 = vmatprep.subr.bf16.mxu0 0
    %1056 = vmatpush1.bf16.xpose.msra.mxu0 %v1038
    %1057 = vmatprep.subr.bf16.mxu0 0
    %1058 = vmatpush1.bf16.xpose.msra.mxu0 %v1035
    %1059 = vmatprep.subr.bf16.mxu0 0
    %1060 = vmatpush1.bf16.xpose.msra.mxu0 %v1032
    %1061 = vmatprep.subr.bf16.mxu0 0
    %1062 = vmatpush1.bf16.xpose.msra.mxu0 %v1029
    %1063 = vmatprep.subr.bf16.mxu0 0
    %1064 = vmatpush1.bf16.xpose.msra.mxu0 %v1026
    %1065 = vmatprep.subr.bf16.mxu0 0
    %1066 = vmatpush2.bf16.xpose.msra.mxu0 0
    %1067 = vmatprep.subr.bf16.mxu0 0
    %1068 = vmatpush2.bf16.xpose.msra.mxu0 0
    %1069 = vmatprep.subr.bf16.mxu0 0
    %1070 = vmatpush2.bf16.xpose.msra.mxu0 0
    %1071 = vmatprep.subr.bf16.mxu0 0
    %1072 = vmatpush2.bf16.xpose.msra.mxu0 0
    %1073 = vmatprep.subr.bf16.mxu0 0
    %1074 = vmatpush2.bf16.xpose.msra.mxu0 0
    %1075 = vmatprep.subr.bf16.mxu0 0
    %1076 = vmatpush2.bf16.xpose.msra.mxu0 0
    %1077 = vmatprep.subr.bf16.mxu0 0
    %1078 = vmatpush2.bf16.xpose.msra.mxu0 0
    %1079 = vmatprep.subr.bf16.mxu0 0
    %1080 = vmatpush2.bf16.xpose.msra.mxu0 0
    %1081 = vmatprep.mubr.bf16.mxu0 0
    %1082 = vmatmul.mubr.bf16.gmra.mxu0 %v1023
    %v1083 = vpop.f32.mrf.mxu0
    %v1084 = vadd.f32 0.0, %v1083
    %v1085 = vpop.f32.mrf.mxu0
    %v1086 = vpop.f32.mrf.mxu0
    %v1087 = vpop.f32.mrf.mxu0
    %1088 = vdwg.mxu0
    %v1089 = vadd.f32 %v995, %v1084
    %v1090 = vld [vmem:[%s901 + $0x2] sm:$0xff]
    %v1091 = vld [vmem:[%s901 + $0x12] sm:$0xff]
    %v1092 = vld [vmem:[%s901 + $0x22] sm:$0xff]
    %v1093 = vld [vmem:[%s901 + $0x32] sm:$0xff]
    %v1094 = vld [vmem:[%s901 + $0x42] sm:$0xff]
    %v1095 = vld [vmem:[%s901 + $0x52] sm:$0xff]
    %v1096 = vld [vmem:[%s901 + $0x62] sm:$0xff]
    %v1097 = vld [vmem:[%s901 + $0x72] sm:$0xff]
    %v1098 = vld [vmem:[%s901 + $0xa2] sm:$0xff]
    %v1099 = vld [vmem:[%s901 + $0xb2] sm:$0xff]
    %v1100 = vld [vmem:[%s901 + $0xc2] sm:$0xff]
    %v1101 = vld [vmem:[%s901 + $0xd2] sm:$0xff]
    %v1102 = vld [vmem:[%s901 + $0xe2] sm:$0xff]
    %v1103 = vld [vmem:[%s901 + $0xf2] sm:$0xff]
    %v1104 = vld [vmem:[%s901 + $0x102] sm:$0xff]
    %v1105 = vld [vmem:[%s901 + $0x112] sm:$0xff]
    %v1106 = vpack.c.bf16 %v1091, %v1090
    %v1107 = vpack.c.bf16 %v1093, %v1092
    %v1108 = vpack.c.bf16 %v1095, %v1094
    %v1109 = vpack.c.bf16 %v1097, %v1096
    %v1110 = vpack.c.bf16 %v1099, %v1098
    %v1111 = vpack.c.bf16 %v1101, %v1100
    %v1112 = vpack.c.bf16 %v1103, %v1102
    %v1113 = vpack.c.bf16 %v1105, %v1104
    %s1114 = scalar_lea.vmem [#allocation8], 8
    %v1115 = vld [vmem:[%s1114] sm:$0x1]
    %v1117 = vsel %vm323, %v1115, 0
    %v1120 = vsel %vm323, %v1106, 0
    %v1123 = vsel %vm323, %v1107, 0
    %v1126 = vsel %vm323, %v1108, 0
    %v1129 = vsel %vm323, %v1109, 0
    %v1132 = vsel %vm323, %v1110, 0
    %v1135 = vsel %vm323, %v1111, 0
    %v1138 = vsel %vm323, %v1112, 0
    %v1141 = vsel %vm323, %v1113, 0
    %1143 = vmatprep.subr.bf16.mxu0 0
    %1144 = vmatpush1.bf16.xpose.msra.mxu0 %v1141
    %1145 = vmatprep.subr.bf16.mxu0 0
    %1146 = vmatpush1.bf16.xpose.msra.mxu0 %v1138
    %1147 = vmatprep.subr.bf16.mxu0 0
    %1148 = vmatpush1.bf16.xpose.msra.mxu0 %v1135
    %1149 = vmatprep.subr.bf16.mxu0 0
    %1150 = vmatpush1.bf16.xpose.msra.mxu0 %v1132
    %1151 = vmatprep.subr.bf16.mxu0 0
    %1152 = vmatpush1.bf16.xpose.msra.mxu0 %v1129
    %1153 = vmatprep.subr.bf16.mxu0 0
    %1154 = vmatpush1.bf16.xpose.msra.mxu0 %v1126
    %1155 = vmatprep.subr.bf16.mxu0 0
    %1156 = vmatpush1.bf16.xpose.msra.mxu0 %v1123
    %1157 = vmatprep.subr.bf16.mxu0 0
    %1158 = vmatpush1.bf16.xpose.msra.mxu0 %v1120
    %1159 = vmatprep.subr.bf16.mxu0 0
    %1160 = vmatpush2.bf16.xpose.msra.mxu0 0
    %1161 = vmatprep.subr.bf16.mxu0 0
    %1162 = vmatpush2.bf16.xpose.msra.mxu0 0
    %1163 = vmatprep.subr.bf16.mxu0 0
    %1164 = vmatpush2.bf16.xpose.msra.mxu0 0
    %1165 = vmatprep.subr.bf16.mxu0 0
    %1166 = vmatpush2.bf16.xpose.msra.mxu0 0
    %1167 = vmatprep.subr.bf16.mxu0 0
    %1168 = vmatpush2.bf16.xpose.msra.mxu0 0
    %1169 = vmatprep.subr.bf16.mxu0 0
    %1170 = vmatpush2.bf16.xpose.msra.mxu0 0
    %1171 = vmatprep.subr.bf16.mxu0 0
    %1172 = vmatpush2.bf16.xpose.msra.mxu0 0
    %1173 = vmatprep.subr.bf16.mxu0 0
    %1174 = vmatpush2.bf16.xpose.msra.mxu0 0
    %1175 = vmatprep.mubr.bf16.mxu0 0
    %1176 = vmatmul.mubr.bf16.gmra.mxu0 %v1117
    %v1177 = vpop.f32.mrf.mxu0
    %v1178 = vadd.f32 0.0, %v1177
    %v1179 = vpop.f32.mrf.mxu0
    %v1180 = vpop.f32.mrf.mxu0
    %v1181 = vpop.f32.mrf.mxu0
    %1182 = vdwg.mxu0
    %v1183 = vadd.f32 %v1089, %v1178
    %v1184 = vld [vmem:[%s3] sm:$0x3]
    %1186 = vset.pattern.permute.xlu0 0
    %1187 = vperm.xlu0 %1186, %v1184
    %v1188 = vpop.permute.xlu0 %1187
    %v1190 = vadd.f32 %v1183, %v1188
    %v1191 = vlaneseq
    %v1192 = vshrl.u32 %v1191, 7
    %vm1193 = vcmp.eq.s32.totalorder %v1192, 0
    %v1194 = vmax.f32 %v1190, 0.0
    %v1195 = vxor.u32 %v1190, 2147483648
    %v1196 = vmul.f32 %v1195, 1.442695
    %v1197 = vpow.pop %v1196
    %v1198 = vadd.f32 %v1197, 1.0
    %v1199 = vrcp.pop %v1198
    %v1200 = vmul.f32 1.0, %v1199
    %v1201 = vsel %vm1193, %v1194, %v1200
    %1202 = vst [vmem:[#allocation9] sm:$0x3] %v1201
    // Predicated region
    $region34: #{tpu_custom_call.1} parent=1 // pred_check
      _
    $region35: #{tpu_custom_call.1} parent=1 // pred_check_branch
      %1204 = sbr.rel (0) target = $region37
    $region36: #{tpu_custom_call.1} parent=1 // pred_region
      %s1206 = ssub.s32 32, 32
      %1207 = vsyncadd [#allocation5], %s1206
      %s1209 = sshll.u32 [#allocation9], 4
      %s1210 = int_to_ptr.vmem [resolvable:$true] %s1209
      %1212 = dma.vmem_to_hbm [thread:$0]  %s1210, 32, %s4, [#allocation5]
    $region37: #{tpu_custom_call.1} parent=1 // pred_fallthru
      _
    // Predicated region
    $region38: #{tpu_custom_call.1} parent=1 // pred_check
      _
    $region39: #{tpu_custom_call.1} parent=1 // pred_check_branch
      %1214 = sbr.rel (0) target = $region41
    $region40: #{tpu_custom_call.1} parent=1 // pred_region
      %1215 = dma.done [#allocation5], 32
    $region41: #{tpu_custom_call.1} parent=1 // pred_fallthru
      _
    %1216 = vsyncpa [#allocation4], 1
    %1217 = vsyncpa [#allocation7], 1
    %1218 = vsyncpa [#allocation5], 1

</llo_original>
